<compile_context>
chip_gen: v5e
topology: v5e:2x2
jax: 0.10.0
libtpu: 0.0.40
codegen_flags: <defaults>
</compile_context>

<pallas_src>
import jax
import jax.numpy as jnp
from jax.experimental import pallas as pl
from jax.experimental.pallas import tpu as pltpu


def _sse_kernel(logits_ref, label_ref, out_ref, acc_ref):
    k = pl.program_id(1)  # class-tile index (reduction axis)

    # Fresh accumulator at the start of every row tile's class sweep.
    @pl.when(k == 0)
    def _():
        acc_ref[...] = jnp.zeros_like(acc_ref)

    x = logits_ref[...].astype(jnp.float32)          # (tile_n, tile_c) f32
    lab = label_ref[...]                             # (tile_n, 1) int32

    # One-hot target built in-register: compare GLOBAL class index to label.
    col = jax.lax.broadcasted_iota(jnp.int32, x.shape, dimension=1)
    col = col + k * x.shape[1]                       # offset by class-tile start
    target = (col == lab).astype(jnp.float32)        # (tile_n, tile_c)

    diff = x - target
    # Sublane reduce only in steady state; keep lanes wide.
    acc_ref[...] += jnp.sum(diff * diff, axis=0, keepdims=True)   # (1, tile_c)

    # Finalize this row tile's partial on the last class tile.
    @pl.when(k == pl.num_programs(1) - 1)
    def _():
        out_ref[...] = 0.5 * jnp.sum(acc_ref[...], axis=1, keepdims=True)  # (1,1)


def _pick_tile_c(C):
    """Largest convenient lane-aligned class tile, or full C if not aligned."""
    if C % 128 != 0:
        return C  # block must equal the full dim when not 128-aligned
    for cand in (2048, 1024, 512, 256, 128):
        if C % cand == 0:
            return cand
    return C


def _pick_tile_n(N, max_rows):
    """Largest divisor of N that is a multiple of 8 and <= max_rows (else N)."""
    if N <= max_rows:
        return N
    if N % 8 != 0:
        return N  # fall back to full dim (block == full array dim is allowed)
    best = None
    for t in range(8, max_rows + 1, 8):
        if N % t == 0:
            best = t
    return best if best is not None else N


def sse(logits, label, *, tile_n=None, tile_c=None):
    """logits: [N, C] (any float dtype); label: int[N] -> scalar f32."""
    N, C = logits.shape
    dtype_bytes = jnp.dtype(logits.dtype).itemsize

    if tile_c is None:
        tile_c = _pick_tile_c(C)
    assert C % tile_c == 0
    assert tile_c == C or tile_c % 128 == 0

    if tile_n is None:
        # ~4 MiB logits block (x2 double buffering) -> safe on v5e/v6e/v7x
        # default scoped-VMEM limits, and big enough to amortize per-step cost.
        target_bytes = 4 * 1024 * 1024
        max_rows = max(8, min(4096, target_bytes // max(1, tile_c * dtype_bytes)))
        tile_n = _pick_tile_n(N, max_rows)
    assert N % tile_n == 0
    assert tile_n == N or tile_n % 8 == 0

    num_n = N // tile_n
    num_c = C // tile_c

    label2d = label.astype(jnp.int32).reshape(N, 1)

    partials = pl.pallas_call(
        _sse_kernel,
        out_shape=jax.ShapeDtypeStruct((num_n, 1), jnp.float32),
        grid_spec=pltpu.PrefetchScalarGridSpec(
            num_scalar_prefetch=0,
            grid=(num_n, num_c),                       # reduction axis last
            in_specs=[
                pl.BlockSpec((tile_n, tile_c), lambda i, k: (i, k)),  # logits
                pl.BlockSpec((tile_n, 1), lambda i, k: (i, 0)),       # labels
            ],
            out_specs=pl.BlockSpec((1, 1), lambda i, k: (i, 0)),      # per-tile partial
            scratch_shapes=[pltpu.VMEM((1, tile_c), jnp.float32)],
        ),
        compiler_params=pltpu.CompilerParams(
            dimension_semantics=("parallel", "arbitrary"),
        ),
    )(logits, label2d)  # NOTE: native dtype, no wrapper upcast

    return jnp.sum(partials)


def _reference_sse(logits, label):
    x = logits.astype(jnp.float32)
    target = jax.nn.one_hot(label, x.shape[1], dtype=jnp.float32)
    return 0.5 * jnp.sum((x - target) ** 2)


if __name__ == "__main__":
    key = jax.random.PRNGKey(0)
    k1, k2, k3, k4 = jax.random.split(key, 4)

    # Small shape matching the module's expected usage (batch=8, classes=16).
    N, C = 8, 16
    logits = jax.random.normal(k1, (N, C), dtype=jnp.float32)
    label = jax.random.randint(k2, (N,), 0, C, dtype=jnp.int32)

    out = jax.block_until_ready(sse(logits, label))
    ref = _reference_sse(logits, label)
    assert jnp.allclose(out, ref, rtol=1e-6, atol=1e-6), (out, ref)

    # Multi-tile path: row + class tiling, bf16 inputs (no wrapper upcast).
    N2, C2 = 256, 384
    logits2 = jax.random.normal(k3, (N2, C2), dtype=jnp.bfloat16)
    label2 = jax.random.randint(k4, (N2,), 0, C2, dtype=jnp.int32)

    out2 = jax.block_until_ready(sse(logits2, label2, tile_n=64, tile_c=128))
    ref2 = _reference_sse(logits2, label2)
    assert jnp.allclose(out2, ref2, rtol=1e-5, atol=1e-2), (out2, ref2)

    print("KERNEL_OK")
</pallas_src>

<mosaic_0001>
module attributes {stable_mosaic.version = 11 : i64} {
  func.func @_sse_kernel(%arg0: i32, %arg1: i32, %arg2: memref<8x16xf32, #tpu.memory_space<vmem>>, %arg3: memref<8x1xi32, #tpu.memory_space<vmem>>, %arg4: memref<1x1xf32, #tpu.memory_space<vmem>>, %arg5: memref<1x16xf32, #tpu.memory_space<vmem>>) attributes {dimension_semantics = [#tpu.dimension_semantics<parallel>, #tpu.dimension_semantics<arbitrary>], iteration_bounds = array<i64: 1, 1>, scalar_prefetch = 0 : i64, scratch_operands = 1 : i64, tpu.core_type = #tpu.core_type<tc>, window_params = [{transform_indices = @transform_0, window_bounds = array<i64: 8, 16>}, {transform_indices = @transform_1, window_bounds = array<i64: 8, 1>}, {transform_indices = @transform_2, window_bounds = array<i64: 1, 1>}]} {
    %c0_i32 = arith.constant 0 : i32
    %0 = arith.cmpi eq, %arg1, %c0_i32 : i32
    %1 = arith.extui %0 : i1 to i32
    %c0_i32_0 = arith.constant 0 : i32
    %2 = arith.cmpi ne, %1, %c0_i32_0 : i32
    scf.if %2 {
      %cst_10 = arith.constant 0.000000e+00 : f32
      %23 = vector.broadcast %cst_10 : f32 to vector<1x16xf32>
      %c0_11 = arith.constant 0 : index
      %c0_12 = arith.constant 0 : index
      %24 = vector.load %arg5[%c0_11, %c0_12] : memref<1x16xf32, #tpu.memory_space<vmem>>, vector<1x16xf32>
      tpu.vector_store %arg5[%c0_11, %c0_12], %23 {strides = array<i32>} : memref<1x16xf32, #tpu.memory_space<vmem>>, vector<1x16xf32>,
    } else {
    }
    %c0 = arith.constant 0 : index
    %c0_1 = arith.constant 0 : index
    %3 = vector.load %arg2[%c0, %c0_1] : memref<8x16xf32, #tpu.memory_space<vmem>>, vector<8x16xf32>
    %c0_2 = arith.constant 0 : index
    %c0_3 = arith.constant 0 : index
    %4 = vector.load %arg3[%c0_2, %c0_3] : memref<8x1xi32, #tpu.memory_space<vmem>>, vector<8x1xi32>
    %5 = tpu.iota {dimensions = array<i32: 1>} : vector<8x16xi32>
    %c16_i32 = arith.constant 16 : i32
    %6 = arith.muli %arg1, %c16_i32 : i32
    %7 = vector.broadcast %6 : i32 to vector<8x16xi32>
    %8 = arith.addi %5, %7 : vector<8x16xi32>
    %9 = vector.broadcast %4 : vector<8x1xi32> to vector<8x16xi32>
    %10 = arith.cmpi eq, %8, %9 : vector<8x16xi32>
    %11 = arith.extui %10 : vector<8x16xi1> to vector<8x16xi32>
    %12 = arith.sitofp %11 : vector<8x16xi32> to vector<8x16xf32>
    %13 = arith.subf %3, %12 : vector<8x16xf32>
    %c0_4 = arith.constant 0 : index
    %c0_5 = arith.constant 0 : index
    %14 = vector.load %arg5[%c0_4, %c0_5] : memref<1x16xf32, #tpu.memory_space<vmem>>, vector<1x16xf32>
    %15 = arith.mulf %13, %13 : vector<8x16xf32>
    %cst = arith.constant dense<0.000000e+00> : vector<16xf32>
    %16 = vector.multi_reduction <add>, %15, %cst [0] : vector<8x16xf32> to vector<16xf32>
    %17 = vector.shape_cast %16 : vector<16xf32> to vector<1x16xf32>
    %18 = arith.addf %14, %17 : vector<1x16xf32>
    %c0_6 = arith.constant 0 : index
    %c0_7 = arith.constant 0 : index
    %19 = vector.load %arg5[%c0_6, %c0_7] : memref<1x16xf32, #tpu.memory_space<vmem>>, vector<1x16xf32>
    tpu.vector_store %arg5[%c0_6, %c0_7], %18 {strides = array<i32>} : memref<1x16xf32, #tpu.memory_space<vmem>>, vector<1x16xf32>,
    %c0_i32_8 = arith.constant 0 : i32
    %20 = arith.cmpi eq, %arg1, %c0_i32_8 : i32
    %21 = arith.extui %20 : i1 to i32
    %c0_i32_9 = arith.constant 0 : i32
    %22 = arith.cmpi ne, %21, %c0_i32_9 : i32
    scf.if %22 {
      %c0_10 = arith.constant 0 : index
      %c0_11 = arith.constant 0 : index
      %23 = vector.load %arg5[%c0_10, %c0_11] : memref<1x16xf32, #tpu.memory_space<vmem>>, vector<1x16xf32>
      %cst_12 = arith.constant dense<0.000000e+00> : vector<1xf32>
      %24 = vector.multi_reduction <add>, %23, %cst_12 [1] : vector<1x16xf32> to vector<1xf32>
      %25 = vector.shape_cast %24 : vector<1xf32> to vector<1x1xf32>
      %cst_13 = arith.constant 5.000000e-01 : f32
      %26 = vector.broadcast %cst_13 : f32 to vector<1x1xf32>
      %27 = arith.mulf %26, %25 : vector<1x1xf32>
      %c0_14 = arith.constant 0 : index
      %c0_15 = arith.constant 0 : index
      %28 = vector.load %arg4[%c0_14, %c0_15] : memref<1x1xf32, #tpu.memory_space<vmem>>, vector<1x1xf32>
      tpu.vector_store %arg4[%c0_14, %c0_15], %27 {strides = array<i32>} : memref<1x1xf32, #tpu.memory_space<vmem>>, vector<1x1xf32>,
    } else {
    }
    return
  }
  func.func @transform_0(%arg0: i32, %arg1: i32) -> (i32, i32) {
    %c0_i32 = arith.constant 0 : i32
    return %arg0, %arg1 : i32, i32
  }
  func.func @transform_1(%arg0: i32, %arg1: i32) -> (i32, i32) {
    %c0_i32 = arith.constant 0 : i32
    %c0_i32_0 = arith.constant 0 : i32
    return %arg0, %c0_i32 : i32, i32
  }
  func.func @transform_2(%arg0: i32, %arg1: i32) -> (i32, i32) {
    %c0_i32 = arith.constant 0 : i32
    %c0_i32_0 = arith.constant 0 : i32
    return %arg0, %c0_i32 : i32, i32
  }
}

</mosaic_0001>

<llo_original>
// kernel: tpu_custom_call.1
$region0: #{tpu_custom_call.1}
  #allocation0 [shape = 'u32[]', space=smem, size = 0x4, offset = 0x4, fixed_abs, tag = 'smem constant byte address 0x4 - core index']
  #allocation1 [shape = 'u32[72,128]{1,0:T(1,128)}', space=vmem, size = 0x9000, scoped, tag = 'internal scratch']
  #allocation2 [shape = 'f32[1,16]{1,0:T(1,128)}', space=vmem, size = 0x200, scoped, tag = 'scratch operand']
  %s0 = inlined_call_operand.vmem [shape: f32[8,16], index: 0, kind: input, shape index: {}]
  %s1 = inlined_call_operand.vmem [shape: s32[8,1], index: 1, kind: input, shape index: {}]
  %s2 = inlined_call_operand.hbm [shape: f32[1,1], index: 2, kind: output, shape index: {}]
  %s3 = sld [smem:[#allocation0]]
  $region26: #{tpu_custom_call.1} parent=0
    _
  %s5 = ssub.s32 1, %s3
  %s6 = scalar_select 0, %s5, %s3
  $region1: #{tpu_custom_call.1} parent=0
    #allocation3 [shape = 'u8[512]{0}', space=vmem, size = 0x400, scoped, tag = 'output window, operand 0, single buffered']
    #allocation4 [shape = 's32[1]{0}', space=sflag, size = 0x4, scoped, tag = 'scoped memory for tpu_custom_call.1']
    %7 = vsyncpa [#allocation4], 0
    // Predicated region
    $region2: #{tpu_custom_call.1} parent=1 // pred_check
      _
    $region3: #{tpu_custom_call.1} parent=1 // pred_check_branch
      %9 = sbr.rel (0) target = $region5
    $region4: #{tpu_custom_call.1} parent=1 // pred_region
      _
    $region5: #{tpu_custom_call.1} parent=1 // pred_fallthru
      _
    // Predicated region
    $region6: #{tpu_custom_call.1} parent=1 // pred_check
      _
    $region7: #{tpu_custom_call.1} parent=1 // pred_check_branch
      %11 = sbr.rel (0) target = $region9
    $region8: #{tpu_custom_call.1} parent=1 // pred_region
      _
    $region9: #{tpu_custom_call.1} parent=1 // pred_fallthru
      _
    %p12 = scmp.eq.s32.totalorder 0, 0
    // Predicated region
    $region10: #{tpu_custom_call.1} parent=1 // pred_check
      %p13 = pneg %p12
    $region11: #{tpu_custom_call.1} parent=1 // pred_check_branch
      %15 = sbr.rel (%p13) target = $region13
    $region12: #{tpu_custom_call.1} parent=1 // pred_region
      %vm16 = vcmask 122880
      %17 = vst.msk [vmem:[#allocation2] sm:$0x1] %vm16, 0.0
    $region13: #{tpu_custom_call.1} parent=1 // pred_fallthru
      _
    %v18 = vld [vmem:[%s0] sm:$0xff]
    %v19 = vld [vmem:[%s1] sm:$0xff]
    %v20 = vlaneseq
    %v21 = vand.u32 %v20, 127
    %s22 = smul.u32 0, 16
    %v23 = vstv %s22
    %v24 = vadd.s32 %v21, %v23
    %25 = vset.pattern.permute.xlu0 0
    %26 = vperm.xlu0 %25, %v19
    %v27 = vpop.permute.xlu0 %26
    %vm28 = vcmp.eq.s32.totalorder %v24, %v27
    %v29 = vsel %vm28, 1, 0
    %v30 = vcvt.s32.f32 %v29
    %v31 = vsub.f32 %v18, %v30
    %v32 = vld [vmem:[#allocation2] sm:$0x1]
    %v33 = vmul.f32 %v31, %v31
    %vm34 = vcmask 130048
    %v35 = vsel %vm34, %v33, 0.0
    %v36 = vrot.slane %v35, 4
    %v37 = vadd.f32 %v35, %v36
    %v38 = vrot.slane %v37, 2
    %v39 = vadd.f32 %v37, %v38
    %v40 = vrot.slane %v39, 1
    %v41 = vadd.f32 %v39, %v40
    %v42 = vadd.f32 %v32, %v41
    %vm43 = vcmask 122880
    %44 = vst.msk [vmem:[#allocation2] sm:$0x1] %vm43, %v42
    // Predicated region
    $region14: #{tpu_custom_call.1} parent=1 // pred_check
      %p45 = pneg %p12
    $region15: #{tpu_custom_call.1} parent=1 // pred_check_branch
      %47 = sbr.rel (%p45) target = $region17
    $region16: #{tpu_custom_call.1} parent=1 // pred_region
      %v48 = vld [vmem:[#allocation2] sm:$0x1]
      %v49 = vsel %vm43, %v48, 0.0
      %50 = vadd.xlane.f32.xlu0 %v49
      %v51 = vpop.xlane.xlu0 %50
      %v52 = vmul.f32 %v51, 0.5
      %vm53 = vcmask 0
      %54 = vst.msk [vmem:[#allocation3] sm:$0x1] %vm53, %v52
    $region17: #{tpu_custom_call.1} parent=1 // pred_fallthru
      _
    // Predicated region
    $region18: #{tpu_custom_call.1} parent=1 // pred_check
      _
    $region19: #{tpu_custom_call.1} parent=1 // pred_check_branch
      %56 = sbr.rel (0) target = $region21
    $region20: #{tpu_custom_call.1} parent=1 // pred_region
      %58 = vsyncadd [#allocation4], 0
      %s60 = sshll.u32 [#allocation3], 4
      %s61 = int_to_ptr.vmem [resolvable:$true] %s60
      %s62 = sshll.u32 %s2, 4
      %s63 = int_to_ptr.hbm [resolvable:$true] %s62
      %65 = dma.vmem_to_hbm [thread:$0]  %s61, 16, %s63, [#allocation4]
    $region21: #{tpu_custom_call.1} parent=1 // pred_fallthru
      _
    // Predicated region
    $region22: #{tpu_custom_call.1} parent=1 // pred_check
      _
    $region23: #{tpu_custom_call.1} parent=1 // pred_check_branch
      %67 = sbr.rel (0) target = $region25
    $region24: #{tpu_custom_call.1} parent=1 // pred_region
      %69 = dma.done [#allocation4], 16
    $region25: #{tpu_custom_call.1} parent=1 // pred_fallthru
      _
    %70 = vsyncpa [#allocation4], 1

</llo_original>
